<compile_context>
chip_gen: v7x
topology: tpu7x:2x2x1
jax: 0.10.0
libtpu: 0.0.40
codegen_flags: <defaults>
</compile_context>

<pallas_src>
import jax
import jax.numpy as jnp
from jax.experimental import pallas as pl
from jax.experimental.pallas import tpu as pltpu


def _round_up(x, m):
    return ((x + m - 1) // m) * m


def _max_sigmoid_kernel(x_ref, o_ref):
    # x_ref: (TB, C, THW) VMEM tile; o_ref: (TB, THW)
    x = x_ref[...]
    m = jnp.max(x, axis=1)                      # channel (sublane-axis) reduce
    o_ref[...] = jax.nn.sigmoid(m).astype(o_ref.dtype)


def _choose_tiles(B, C, HW, itemsize):
    # Sublane tile on batch: 8 rows for 32-bit, 16 for 16-bit (packed sublanes).
    TB = 8 if itemsize >= 4 else 16
    TB = min(TB, B)
    Bp = _round_up(B, TB)

    # Lane tile on spatial: multiple of 128, sized so the double-buffered input
    # block (2 * TB * C * THW * itemsize) stays under ~8 MiB. This fits the
    # default scoped VMEM on every generation (incl. v7x's 64 MiB physical).
    budget_bytes = 8 * 1024 * 1024
    max_thw = (budget_bytes // (2 * TB * C * itemsize)) // 128 * 128
    max_thw = max(128, max_thw)
    HW128 = _round_up(HW, 128)
    THW = min(HW128, max_thw)
    HWp = _round_up(HW, THW)
    return TB, Bp, THW, HWp


def mlp_spatial_attention(x, *, force_pallas=False):
    """x: (B, C, H, W) -> (B, 1, H, W), sigmoid(max over channels)."""
    B, C, H, W = x.shape
    HW = H * W
    itemsize = jnp.dtype(x.dtype).itemsize

    # Tiny activations: per-grid-step + launch overhead dwarfs the work; let
    # XLA fuse the reduce+sigmoid instead (the test forces the Pallas path).
    if not force_pallas and B * C * HW * itemsize < (1 << 18):
        return jax.nn.sigmoid(jnp.max(x, axis=1, keepdims=True))

    TB, Bp, THW, HWp = _choose_tiles(B, C, HW, itemsize)

    x_flat = x.reshape(B, C, HW)
    if (Bp, HWp) != (B, HW):
        # Zero-pad batch / spatial so the grid divides evenly; padded lanes
        # produce sigmoid(0) and are sliced away below (never contaminate the
        # channel reduction, which is per (b, hw) position).
        x_flat = jnp.pad(x_flat, ((0, Bp - B), (0, 0), (0, HWp - HW)))

    grid = (Bp // TB, HWp // THW)

    cost = pl.CostEstimate(
        flops=Bp * C * HWp,                       # C-way max per output lane
        transcendentals=Bp * HWp,                 # one sigmoid per output lane
        bytes_accessed=Bp * C * HWp * itemsize + Bp * HWp * itemsize,
    )

    out_flat = pl.pallas_call(
        _max_sigmoid_kernel,
        out_shape=jax.ShapeDtypeStruct((Bp, HWp), x.dtype),
        grid_spec=pltpu.PrefetchScalarGridSpec(
            num_scalar_prefetch=0,
            grid=grid,
            in_specs=[pl.BlockSpec((TB, C, THW), lambda b, h: (b, 0, h))],
            out_specs=pl.BlockSpec((TB, THW), lambda b, h: (b, h)),
        ),
        compiler_params=pltpu.CompilerParams(
            dimension_semantics=("parallel", "parallel"),
            vmem_limit_bytes=32 * 1024 * 1024,
        ),
        cost_estimate=cost,
    )(x_flat)

    return out_flat[:B, :HW].reshape(B, 1, H, W)


def _reference(x):
    return jax.nn.sigmoid(jnp.max(x, axis=1, keepdims=True))


if __name__ == "__main__":
    key = jax.random.PRNGKey(0)
    # Small shapes consistent with the module's NCHW forward.
    B, C, H, W = 2, 4, 16, 16
    x = jax.random.normal(key, (B, C, H, W), dtype=jnp.float32)

    out = mlp_spatial_attention(x, force_pallas=True)
    out = jax.block_until_ready(out)

    ref = _reference(x)
    assert out.shape == (B, 1, H, W), out.shape
    assert jnp.allclose(out, ref, atol=1e-6, rtol=1e-6), "mismatch vs reference"

    print("KERNEL_OK")
</pallas_src>

<mosaic_0001>
module attributes {stable_mosaic.version = 11 : i64} {
  func.func @_max_sigmoid_kernel(%arg0: i32, %arg1: i32, %arg2: memref<2x4x256xf32, #tpu.memory_space<vmem>>, %arg3: memref<2x256xf32, #tpu.memory_space<vmem>>) attributes {dimension_semantics = [#tpu.dimension_semantics<parallel>, #tpu.dimension_semantics<parallel>], iteration_bounds = array<i64: 1, 1>, scalar_prefetch = 0 : i64, scratch_operands = 0 : i64, tpu.core_type = #tpu.core_type<tc>, window_params = [{transform_indices = @transform_0, window_bounds = array<i64: 2, 4, 256>}, {transform_indices = @transform_1, window_bounds = array<i64: 2, 256>}]} {
    %c0 = arith.constant 0 : index
    %c0_0 = arith.constant 0 : index
    %c0_1 = arith.constant 0 : index
    %0 = vector.load %arg2[%c0, %c0_0, %c0_1] : memref<2x4x256xf32, #tpu.memory_space<vmem>>, vector<2x4x256xf32>
    %cst = arith.constant dense<0xFF800000> : vector<2x256xf32>
    %1 = vector.multi_reduction <maximumf>, %0, %cst [1] : vector<2x4x256xf32> to vector<2x256xf32>
    %2 = arith.negf %1 : vector<2x256xf32>
    %3 = math.exp %2 : vector<2x256xf32>
    %cst_2 = arith.constant 1.000000e+00 : f32
    %4 = vector.broadcast %cst_2 : f32 to vector<2x256xf32>
    %5 = arith.addf %4, %3 : vector<2x256xf32>
    %6 = arith.divf %4, %5 : vector<2x256xf32>
    %c0_3 = arith.constant 0 : index
    %c0_4 = arith.constant 0 : index
    %7 = vector.load %arg3[%c0_3, %c0_4] : memref<2x256xf32, #tpu.memory_space<vmem>>, vector<2x256xf32>
    tpu.vector_store %arg3[%c0_3, %c0_4], %6 {strides = array<i32>} : memref<2x256xf32, #tpu.memory_space<vmem>>, vector<2x256xf32>,
    return
  }
  func.func @transform_0(%arg0: i32, %arg1: i32) -> (i32, i32, i32) {
    %c0_i32 = arith.constant 0 : i32
    %c0_i32_0 = arith.constant 0 : i32
    return %arg0, %c0_i32, %arg1 : i32, i32, i32
  }
  func.func @transform_1(%arg0: i32, %arg1: i32) -> (i32, i32) {
    %c0_i32 = arith.constant 0 : i32
    return %arg0, %arg1 : i32, i32
  }
}

</mosaic_0001>

<llo_original>
// kernel: tpu_custom_call.1
$region0: #{tpu_custom_call.1}
  #allocation0 [shape = 'u32[]', space=smem, size = 0x4, offset = 0x4, fixed_abs, tag = 'smem constant byte address 0x4 - core index']
  #allocation1 [shape = 'u32[144,128]{1,0:T(1,128)}', space=vmem, size = 0x12000, scoped, tag = 'internal scratch']
  %s0 = inlined_call_operand.hbm [shape: f32[2,4,256], index: 0, kind: input, shape index: {}]
  %s1 = inlined_call_operand.hbm [shape: f32[2,256], index: 1, kind: output, shape index: {}]
  %s2 = sld [smem:[#allocation0]]
  $region18: #{tpu_custom_call.1} parent=0
    _
  %s4 = ssub.s32 1, %s2
  %s5 = scalar_select 0, %s4, %s2
  $region1: #{tpu_custom_call.1} parent=0
    #allocation2 [shape = 'u8[8192]{0}', space=vmem, size = 0x2000, scoped, tag = 'input window, operand 0, single buffered']
    #allocation3 [shape = 's32[1]{0}', space=sflag, size = 0x4, scoped, tag = 'scoped memory for tpu_custom_call.1']
    #allocation4 [shape = 's32[1]{0}', space=sflag, size = 0x4, scoped, tag = 'scoped memory for tpu_custom_call.1']
    #allocation5 [shape = 'u8[2048]{0}', space=vmem, size = 0x800, scoped, tag = 'output window, operand 0, single buffered']
    %6 = vsyncpa [#allocation3], 0
    %7 = vsyncpa [#allocation4], 0
    // Predicated region
    $region2: #{tpu_custom_call.1} parent=1 // pred_check
      _
    $region3: #{tpu_custom_call.1} parent=1 // pred_check_branch
      %9 = sbr.rel (0) target = $region5
    $region4: #{tpu_custom_call.1} parent=1 // pred_region
      %s11 = ssub.s32 256, 256
      %12 = vsyncadd [#allocation3], %s11
      %s13 = sshll.u32 [#allocation2], 4
      %s14 = int_to_ptr.vmem [resolvable:$true] %s13
      %19 = dma.hbm_to_vmem [thread:$0]  %s0, 256, %s14, [#allocation3], 128, 128, 8
    $region5: #{tpu_custom_call.1} parent=1 // pred_fallthru
      _
    // Predicated region
    $region6: #{tpu_custom_call.1} parent=1 // pred_check
      _
    $region7: #{tpu_custom_call.1} parent=1 // pred_check_branch
      %21 = sbr.rel (0) target = $region9
    $region8: #{tpu_custom_call.1} parent=1 // pred_region
      %22 = dma.done [#allocation3], 256
    $region9: #{tpu_custom_call.1} parent=1 // pred_fallthru
      _
    %v23 = vld [vmem:[#allocation2] sm:$0xff]
    %v24 = vld [vmem:[#allocation2 + $0x8] sm:$0xff]
    %v27 = vcombine.high %v23, %v23
    %v28 = vcombine.high %v24, %v24
    %vm31 = vcmask 1043456
    %v32 = vsel %vm31, %v23, -inf
    %v33 = vrot.slane %v32, 4
    %v34 = vmax.f32 %v32, %v33
    %v35 = vrot.slane %v34, 2
    %v36 = vmax.f32 %v34, %v35
    %v37 = vrot.slane %v36, 1
    %v38 = vmax.f32 %v36, %v37
    %v39 = vsel %vm31, %v27, -inf
    %v40 = vrot.slane %v39, 4
    %v41 = vmax.f32 %v39, %v40
    %v42 = vrot.slane %v41, 2
    %v43 = vmax.f32 %v41, %v42
    %v44 = vrot.slane %v43, 1
    %v45 = vmax.f32 %v43, %v44
    %v46 = vsel %vm31, %v24, -inf
    %v47 = vrot.slane %v46, 4
    %v48 = vmax.f32 %v46, %v47
    %v49 = vrot.slane %v48, 2
    %v50 = vmax.f32 %v48, %v49
    %v51 = vrot.slane %v50, 1
    %v52 = vmax.f32 %v50, %v51
    %v53 = vsel %vm31, %v28, -inf
    %v54 = vrot.slane %v53, 4
    %v55 = vmax.f32 %v53, %v54
    %v56 = vrot.slane %v55, 2
    %v57 = vmax.f32 %v55, %v56
    %v58 = vrot.slane %v57, 1
    %v59 = vmax.f32 %v57, %v58
    %v60 = vxor.u32 %v38, 2147483648
    %v61 = vxor.u32 %v45, 2147483648
    %v62 = vxor.u32 %v52, 2147483648
    %v63 = vxor.u32 %v59, 2147483648
    %v64 = vmul.f32 %v60, 1.442695
    %v65 = vpow.pop %v64
    %v66 = vmul.f32 %v61, 1.442695
    %v67 = vpow.pop %v66
    %v68 = vmul.f32 %v62, 1.442695
    %v69 = vpow.pop %v68
    %v70 = vmul.f32 %v63, 1.442695
    %v71 = vpow.pop %v70
    %v72 = vadd.f32 %v65, 1.0
    %v73 = vadd.f32 %v67, 1.0
    %v74 = vadd.f32 %v69, 1.0
    %v75 = vadd.f32 %v71, 1.0
    %v76 = vrcp.pop %v72
    %v77 = vmul.f32 1.0, %v76
    %v78 = vrcp.pop %v73
    %v79 = vmul.f32 1.0, %v78
    %v80 = vrcp.pop %v74
    %v81 = vmul.f32 1.0, %v80
    %v82 = vrcp.pop %v75
    %v83 = vmul.f32 1.0, %v82
    %v88 = vcombine.low %v77, %v79
    %v90 = vunpack.c.l.s4 1983009808
    %v91 = vunpack.c.0.s8 %v90
    %v92 = vlaneseq
    %v93 = vshrl.u32 %v92, 7
    %v94 = vsub.s32 %v91, %v93
    %v95 = vrot.slane %v88, %v94
    %v96 = vcombine.low %v81, %v83
    %v98 = vunpack.c.l.s4 1983009808
    %v99 = vunpack.c.0.s8 %v98
    %v100 = vlaneseq
    %v101 = vshrl.u32 %v100, 7
    %v102 = vsub.s32 %v99, %v101
    %v103 = vrot.slane %v96, %v102
    %vm104 = vcmask 1044484
    %v105 = vsel %vm104, %v95, %v95
    %vm106 = vcmask 1046534
    %v107 = vsel %vm106, %v95, %v105
    %v108 = vrot.slane %v103, 7
    %vm109 = vcmask 1041409
    %v110 = vsel %vm109, %v108, %v107
    %vm111 = vcmask 1043459
    %v112 = vsel %vm111, %v108, %v110
    %vm113 = vcmask 1045509
    %v114 = vsel %vm113, %v108, %v112
    %vm115 = vcmask 1047559
    %v116 = vsel %vm115, %v108, %v114
    %118 = vst [vmem:[#allocation5] sm:$0xf] %v116
    // Predicated region
    $region10: #{tpu_custom_call.1} parent=1 // pred_check
      _
    $region11: #{tpu_custom_call.1} parent=1 // pred_check_branch
      %120 = sbr.rel (0) target = $region13
    $region12: #{tpu_custom_call.1} parent=1 // pred_region
      %s122 = ssub.s32 64, 64
      %123 = vsyncadd [#allocation4], %s122
      %s125 = sshll.u32 [#allocation5], 4
      %s126 = int_to_ptr.vmem [resolvable:$true] %s125
      %128 = dma.vmem_to_hbm [thread:$0]  %s126, 64, %s1, [#allocation4]
    $region13: #{tpu_custom_call.1} parent=1 // pred_fallthru
      _
    // Predicated region
    $region14: #{tpu_custom_call.1} parent=1 // pred_check
      _
    $region15: #{tpu_custom_call.1} parent=1 // pred_check_branch
      %130 = sbr.rel (0) target = $region17
    $region16: #{tpu_custom_call.1} parent=1 // pred_region
      %131 = dma.done [#allocation4], 64
    $region17: #{tpu_custom_call.1} parent=1 // pred_fallthru
      _
    %132 = vsyncpa [#allocation3], 1
    %133 = vsyncpa [#allocation4], 1

</llo_original>
